<compile_context>
chip_gen: v6e
topology: v6e:2x2x1
jax: 0.10.0
libtpu: 0.0.40
codegen_flags: <defaults>
</compile_context>

<pallas_src>
import jax
import jax.numpy as jnp
from jax.experimental import pallas as pl
from jax.experimental.pallas import tpu as pltpu


_LANE = 128
# 128K lanes/tile: double-buffered in+out blocks (sublane-padded to 8 rows each) are
# ~16 MB of VMEM -- comfortably under the 32 MiB limit we request below on every chip.
_MAX_TILE = 128 * 1024
_VMEM_LIMIT_BYTES = 32 * 1024 * 1024


def _round_up(n, m):
    return ((n + m - 1) // m) * m


def attacker_kernel(w_ref, b_ref, xT_ref, oT_ref):
    """Fused affine map, lane-dense along the batch axis.

    w_ref : SMEM (out, in)      fused weight  ((w1 @ w2).T)
    b_ref : SMEM (out,)         fused bias    (b1 @ w2 + b2)
    xT_ref: VMEM (in, TILE_B)   input, batch on the lane axis
    oT_ref: VMEM (out, TILE_B)  output, batch on the lane axis
    """
    out_features, in_features = w_ref.shape      # static (2, 3) -> fully unrolled
    x = xT_ref[...].astype(jnp.float32)          # single load, f32 compute (v5e has no bf16 VPU)
    rows = []
    for j in range(out_features):
        acc = b_ref[j] + w_ref[j, 0] * x[0:1, :]
        for k in range(1, in_features):
            acc = acc + w_ref[j, k] * x[k:k + 1, :]
        rows.append(acc)
    # One unmasked (out, TILE_B) store instead of two 1-sublane masked stores.
    oT_ref[...] = jnp.concatenate(rows, axis=0).astype(oT_ref.dtype)


def attacker_forward(x, w1, b1, w2, b2, tile_cap=_MAX_TILE):
    """x: (B, in), w1: (in, hidden), b1: (1, hidden), w2: (hidden, out), b2: (1, out).
    Returns (B, out) == (x @ w1 + b1) @ w2 + b2 (PyTorch Attacker.forward)."""
    B, in_features = x.shape
    out_features = w2.shape[1]

    # --- fuse the two affine layers (no nonlinearity between them) ---
    w_fused = w1.astype(jnp.float32) @ w2.astype(jnp.float32)                  # (in, out)
    b_fused = b1.astype(jnp.float32) @ w2.astype(jnp.float32) + b2.astype(jnp.float32)
    wT = w_fused.T                                                             # (out, in)  -> SMEM
    bias = b_fused.reshape(out_features)                                       # (out,)     -> SMEM

    # --- lane-dense layout: batch on the 128-lane axis, pipelined batch grid ---
    # Pad B only to a 128-lane multiple, then split into equal big tiles.
    b128 = _round_up(max(B, 1), _LANE)
    n_steps = pl.cdiv(b128, tile_cap)
    if n_steps == 1 and b128 >= 8 * _LANE:
        n_steps = 2                       # give both v7x TensorCores a tile for larger B
    tile = _round_up(pl.cdiv(b128, n_steps), _LANE)
    b_pad = tile * n_steps                # waste <= 128 columns per grid step

    # Keep x's dtype (e.g. bf16) across the boundary; the kernel casts to f32 internally.
    xT = jnp.pad(x.T, ((0, 0), (0, b_pad - B)))                                # (in, b_pad)

    itemsize = jnp.dtype(x.dtype).itemsize
    oT = pl.pallas_call(
        attacker_kernel,
        out_shape=jax.ShapeDtypeStruct((out_features, b_pad), x.dtype),
        grid=(n_steps,),
        in_specs=[
            pl.BlockSpec(memory_space=pltpu.MemorySpace.SMEM),     # fused weights (2,3)
            pl.BlockSpec(memory_space=pltpu.MemorySpace.SMEM),     # fused bias    (2,)
            pl.BlockSpec((in_features, tile), lambda i: (0, i)),   # x tile (lane-dense)
        ],
        out_specs=pl.BlockSpec((out_features, tile), lambda i: (0, i)),
        compiler_params=pltpu.CompilerParams(
            dimension_semantics=("parallel",),        # shard batch tiles across TCs (v7x)
            vmem_limit_bytes=_VMEM_LIMIT_BYTES,       # v5e scoped default (16 MiB) is too small
        ),
        cost_estimate=pl.CostEstimate(
            flops=2 * out_features * in_features * b_pad,
            bytes_accessed=(in_features + out_features) * b_pad * itemsize,
            transcendentals=0,
        ),
    )(wT, bias, xT)

    return oT[:, :B].T                                # back to the (B, out) contract


def init_params(key, input_size=3, hidden_size=64, output=2):
    """Deterministic PyTorch-style (uniform +-1/sqrt(fan_in)) init, weights kept as (in, out)."""
    k1, k2, k3, k4 = jax.random.split(key, 4)
    bound1 = 1.0 / jnp.sqrt(input_size)
    bound2 = 1.0 / jnp.sqrt(hidden_size)
    w1 = jax.random.uniform(k1, (input_size, hidden_size), jnp.float32, -bound1, bound1)
    b1 = jax.random.uniform(k2, (1, hidden_size), jnp.float32, -bound1, bound1)
    w2 = jax.random.uniform(k3, (hidden_size, output), jnp.float32, -bound2, bound2)
    b2 = jax.random.uniform(k4, (1, output), jnp.float32, -bound2, bound2)
    return w1, b1, w2, b2


if __name__ == "__main__":
    key = jax.random.PRNGKey(0)
    k_params, k_x1, k_x2 = jax.random.split(key, 3)

    input_size, hidden_size, output = 3, 64, 2
    w1, b1, w2, b2 = init_params(k_params, input_size, hidden_size, output)

    # Small batch (single 128-lane tile, single grid step).
    B1 = 8
    x1 = jax.random.normal(k_x1, (B1, input_size), jnp.float32)
    y1 = attacker_forward(x1, w1, b1, w2, b2)
    jax.block_until_ready(y1)
    y1_ref = (x1 @ w1 + b1) @ w2 + b2
    assert y1.shape == (B1, output)
    assert jnp.allclose(y1, y1_ref, atol=1e-4, rtol=1e-4)

    # Non-multiple-of-128 batch that exercises padding + the multi-step (grid>=2) path.
    B2 = 1500
    x2 = jax.random.normal(k_x2, (B2, input_size), jnp.float32)
    y2 = attacker_forward(x2, w1, b1, w2, b2)
    jax.block_until_ready(y2)
    y2_ref = (x2 @ w1 + b1) @ w2 + b2
    assert y2.shape == (B2, output)
    assert jnp.allclose(y2, y2_ref, atol=1e-4, rtol=1e-4)

    print("KERNEL_OK")
</pallas_src>

<mosaic_0001>
module attributes {stable_mosaic.version = 11 : i64} {
  func.func @attacker_kernel(%arg0: i32, %arg1: memref<2x3xf32, #tpu.memory_space<smem>>, %arg2: memref<2xf32, #tpu.memory_space<smem>>, %arg3: memref<3x128xf32, #tpu.memory_space<vmem>>, %arg4: memref<2x128xf32, #tpu.memory_space<vmem>>) attributes {dimension_semantics = [#tpu.dimension_semantics<parallel>], iteration_bounds = array<i64: 1>, scalar_prefetch = 0 : i64, scratch_operands = 0 : i64, tpu.core_type = #tpu.core_type<tc>, window_params = [{transform_indices = @transform_0, window_bounds = array<i64: 2, 3>}, {transform_indices = @transform_1, window_bounds = array<i64: 2>}, {transform_indices = @transform_2, window_bounds = array<i64: 3, 128>}, {transform_indices = @transform_3, window_bounds = array<i64: 2, 128>}]} {
    %c0 = arith.constant 0 : index
    %c0_0 = arith.constant 0 : index
    %0 = vector.load %arg3[%c0, %c0_0] : memref<3x128xf32, #tpu.memory_space<vmem>>, vector<3x128xf32>
    %c0_1 = arith.constant 0 : index
    %1 = memref.load %arg2[%c0_1] : memref<2xf32, #tpu.memory_space<smem>>
    %c0_2 = arith.constant 0 : index
    %c0_3 = arith.constant 0 : index
    %2 = memref.load %arg1[%c0_2, %c0_3] : memref<2x3xf32, #tpu.memory_space<smem>>
    %3 = vector.extract_strided_slice %0 {offsets = [0, 0], sizes = [1, 128], strides = [1, 1]} : vector<3x128xf32> to vector<1x128xf32>
    %4 = vector.broadcast %2 : f32 to vector<1x128xf32>
    %5 = arith.mulf %4, %3 : vector<1x128xf32>
    %6 = vector.broadcast %1 : f32 to vector<1x128xf32>
    %7 = arith.addf %6, %5 : vector<1x128xf32>
    %c0_4 = arith.constant 0 : index
    %c1 = arith.constant 1 : index
    %8 = memref.load %arg1[%c0_4, %c1] : memref<2x3xf32, #tpu.memory_space<smem>>
    %9 = vector.extract_strided_slice %0 {offsets = [1, 0], sizes = [1, 128], strides = [1, 1]} : vector<3x128xf32> to vector<1x128xf32>
    %10 = vector.broadcast %8 : f32 to vector<1x128xf32>
    %11 = arith.mulf %10, %9 : vector<1x128xf32>
    %12 = arith.addf %7, %11 : vector<1x128xf32>
    %c0_5 = arith.constant 0 : index
    %c2 = arith.constant 2 : index
    %13 = memref.load %arg1[%c0_5, %c2] : memref<2x3xf32, #tpu.memory_space<smem>>
    %14 = vector.extract_strided_slice %0 {offsets = [2, 0], sizes = [1, 128], strides = [1, 1]} : vector<3x128xf32> to vector<1x128xf32>
    %15 = vector.broadcast %13 : f32 to vector<1x128xf32>
    %16 = arith.mulf %15, %14 : vector<1x128xf32>
    %17 = arith.addf %12, %16 : vector<1x128xf32>
    %c1_6 = arith.constant 1 : index
    %18 = memref.load %arg2[%c1_6] : memref<2xf32, #tpu.memory_space<smem>>
    %c1_7 = arith.constant 1 : index
    %c0_8 = arith.constant 0 : index
    %19 = memref.load %arg1[%c1_7, %c0_8] : memref<2x3xf32, #tpu.memory_space<smem>>
    %20 = vector.extract_strided_slice %0 {offsets = [0, 0], sizes = [1, 128], strides = [1, 1]} : vector<3x128xf32> to vector<1x128xf32>
    %21 = vector.broadcast %19 : f32 to vector<1x128xf32>
    %22 = arith.mulf %21, %20 : vector<1x128xf32>
    %23 = vector.broadcast %18 : f32 to vector<1x128xf32>
    %24 = arith.addf %23, %22 : vector<1x128xf32>
    %c1_9 = arith.constant 1 : index
    %c1_10 = arith.constant 1 : index
    %25 = memref.load %arg1[%c1_9, %c1_10] : memref<2x3xf32, #tpu.memory_space<smem>>
    %26 = vector.extract_strided_slice %0 {offsets = [1, 0], sizes = [1, 128], strides = [1, 1]} : vector<3x128xf32> to vector<1x128xf32>
    %27 = vector.broadcast %25 : f32 to vector<1x128xf32>
    %28 = arith.mulf %27, %26 : vector<1x128xf32>
    %29 = arith.addf %24, %28 : vector<1x128xf32>
    %c1_11 = arith.constant 1 : index
    %c2_12 = arith.constant 2 : index
    %30 = memref.load %arg1[%c1_11, %c2_12] : memref<2x3xf32, #tpu.memory_space<smem>>
    %31 = vector.extract_strided_slice %0 {offsets = [2, 0], sizes = [1, 128], strides = [1, 1]} : vector<3x128xf32> to vector<1x128xf32>
    %32 = vector.broadcast %30 : f32 to vector<1x128xf32>
    %33 = arith.mulf %32, %31 : vector<1x128xf32>
    %34 = arith.addf %29, %33 : vector<1x128xf32>
    %35 = tpu.concatenate %17, %34 in 0 : vector<1x128xf32>, vector<1x128xf32> -> vector<2x128xf32>
    %c0_13 = arith.constant 0 : index
    %c0_14 = arith.constant 0 : index
    %36 = vector.load %arg4[%c0_13, %c0_14] : memref<2x128xf32, #tpu.memory_space<vmem>>, vector<2x128xf32>
    tpu.vector_store %arg4[%c0_13, %c0_14], %35 {strides = array<i32>} : memref<2x128xf32, #tpu.memory_space<vmem>>, vector<2x128xf32>,
    return
  }
  func.func @transform_0(%arg0: i32) -> (i32, i32) {
    %c0_i32 = arith.constant 0 : i32
    %c0_i32_0 = arith.constant 0 : i32
    %c0_i32_1 = arith.constant 0 : i32
    return %c0_i32, %c0_i32_0 : i32, i32
  }
  func.func @transform_1(%arg0: i32) -> i32 {
    %c0_i32 = arith.constant 0 : i32
    %c0_i32_0 = arith.constant 0 : i32
    return %c0_i32 : i32
  }
  func.func @transform_2(%arg0: i32) -> (i32, i32) {
    %c0_i32 = arith.constant 0 : i32
    %c0_i32_0 = arith.constant 0 : i32
    return %c0_i32, %arg0 : i32, i32
  }
  func.func @transform_3(%arg0: i32) -> (i32, i32) {
    %c0_i32 = arith.constant 0 : i32
    %c0_i32_0 = arith.constant 0 : i32
    return %c0_i32, %arg0 : i32, i32
  }
}

</mosaic_0001>

<llo_original>
// kernel: tpu_custom_call.1
$region0: #{tpu_custom_call.1}
  #allocation0 [shape = 'u32[]', space=smem, size = 0x4, offset = 0x4, fixed_abs, tag = 'smem constant byte address 0x4 - core index']
  #allocation1 [shape = 'u32[144,128]{1,0:T(1,128)}', space=vmem, size = 0x12000, scoped, tag = 'internal scratch']
  %s0 = inlined_call_operand.hbm [shape: f32[2,3], index: 0, kind: input, shape index: {}]
  %s1 = inlined_call_operand.vmem [shape: f32[2], index: 1, kind: input, shape index: {}]
  %s2 = inlined_call_operand.hbm [shape: f32[3,128], index: 2, kind: input, shape index: {}]
  %s3 = inlined_call_operand.hbm [shape: f32[2,128], index: 3, kind: output, shape index: {}]
  %s4 = sld [smem:[#allocation0]]
  $region34: #{tpu_custom_call.1} parent=0
    _
  %s6 = ssub.s32 1, %s4
  %s7 = scalar_select 0, %s6, %s4
  $region1: #{tpu_custom_call.1} parent=0
    #allocation2 [shape = 'u8[1024]{0}', space=smem, size = 0x400, scoped, tag = 'input window, operand 0, single buffered']
    #allocation3 [shape = 's32[1]{0}', space=sflag, size = 0x4, scoped, tag = 'scoped memory for tpu_custom_call.1']
    #allocation4 [shape = 's32[1]{0}', space=sflag, size = 0x4, scoped, tag = 'scoped memory for tpu_custom_call.1']
    #allocation5 [shape = 's32[1]{0}', space=sflag, size = 0x4, scoped, tag = 'scoped memory for tpu_custom_call.1']
    #allocation6 [shape = 's32[1]{0}', space=sflag, size = 0x4, scoped, tag = 'scoped memory for tpu_custom_call.1']
    #allocation7 [shape = 'u8[512]{0}', space=smem, size = 0x200, scoped, tag = 'input window, operand 1, single buffered']
    #allocation8 [shape = 'u8[2048]{0}', space=vmem, size = 0x800, scoped, tag = 'input window, operand 2, single buffered']
    #allocation9 [shape = 'u8[1024]{0}', space=vmem, size = 0x400, scoped, tag = 'output window, operand 0, single buffered']
    %8 = vsyncpa [#allocation5], 0
    %9 = vsyncpa [#allocation6], 0
    %10 = vsyncpa [#allocation3], 0
    %11 = vsyncpa [#allocation4], 0
    // Predicated region
    $region2: #{tpu_custom_call.1} parent=1 // pred_check
      _
    $region3: #{tpu_custom_call.1} parent=1 // pred_check_branch
      %13 = sbr.rel (0) target = $region5
    $region4: #{tpu_custom_call.1} parent=1 // pred_region
      %s15 = ssub.s32 32, 32
      %16 = vsyncadd [#allocation5], %s15
      %19 = dma.hbm_to_smem %s0, 32, [#allocation2], [#allocation5]
    $region5: #{tpu_custom_call.1} parent=1 // pred_fallthru
      _
    // Predicated region
    $region6: #{tpu_custom_call.1} parent=1 // pred_check
      _
    $region7: #{tpu_custom_call.1} parent=1 // pred_check_branch
      %21 = sbr.rel (0) target = $region9
    $region8: #{tpu_custom_call.1} parent=1 // pred_region
      %s23 = ssub.s32 16, 16
      %24 = vsyncadd [#allocation6], %s23
      %s26 = sshll.u32 %s1, 4
      %s27 = int_to_ptr.vmem [resolvable:$true] %s26
      %29 = dma.vmem_to_smem %s27, 16, [#allocation7], [#allocation6]
    $region9: #{tpu_custom_call.1} parent=1 // pred_fallthru
      _
    // Predicated region
    $region10: #{tpu_custom_call.1} parent=1 // pred_check
      _
    $region11: #{tpu_custom_call.1} parent=1 // pred_check_branch
      %31 = sbr.rel (0) target = $region13
    $region12: #{tpu_custom_call.1} parent=1 // pred_region
      %s33 = ssub.s32 64, 64
      %34 = vsyncadd [#allocation3], %s33
      %s36 = sshll.u32 [#allocation8], 4
      %s37 = int_to_ptr.vmem [resolvable:$true] %s36
      %39 = dma.hbm_to_vmem [thread:$0]  %s2, 64, %s37, [#allocation3]
    $region13: #{tpu_custom_call.1} parent=1 // pred_fallthru
      _
    // Predicated region
    $region14: #{tpu_custom_call.1} parent=1 // pred_check
      _
    $region15: #{tpu_custom_call.1} parent=1 // pred_check_branch
      %41 = sbr.rel (0) target = $region17
    $region16: #{tpu_custom_call.1} parent=1 // pred_region
      %42 = dma.done [#allocation5], 32
    $region17: #{tpu_custom_call.1} parent=1 // pred_fallthru
      _
    // Predicated region
    $region18: #{tpu_custom_call.1} parent=1 // pred_check
      _
    $region19: #{tpu_custom_call.1} parent=1 // pred_check_branch
      %44 = sbr.rel (0) target = $region21
    $region20: #{tpu_custom_call.1} parent=1 // pred_region
      %45 = dma.done [#allocation6], 16
    $region21: #{tpu_custom_call.1} parent=1 // pred_fallthru
      _
    // Predicated region
    $region22: #{tpu_custom_call.1} parent=1 // pred_check
      _
    $region23: #{tpu_custom_call.1} parent=1 // pred_check_branch
      %47 = sbr.rel (0) target = $region25
    $region24: #{tpu_custom_call.1} parent=1 // pred_region
      %48 = dma.done [#allocation3], 64
    $region25: #{tpu_custom_call.1} parent=1 // pred_fallthru
      _
    %49 = sfence
    %v50 = vld [vmem:[#allocation8] sm:$0x7]
    %s51 = sld [smem:[#allocation7]]
    %s52 = sld [smem:[#allocation2]]
    %v53 = vstv %s52
    %v54 = vmul.f32 %v53, %v50
    %v55 = vstv %s51
    %v56 = vadd.f32 %v55, %v54
    %s57 = sld [smem:[#allocation2 + $0x1]]
    %v58 = vstv %s57
    %v59 = vmul.f32 %v58, %v50
    %v61 = vrot.slane %v59, 1
    %v63 = vadd.f32 %v56, %v61
    %s64 = sld [smem:[#allocation2 + $0x2]]
    %v65 = vstv %s64
    %v66 = vmul.f32 %v65, %v50
    %v68 = vrot.slane %v66, 2
    %v70 = vadd.f32 %v63, %v68
    %s71 = sld [smem:[#allocation7 + $0x1]]
    %s72 = sld [smem:[#allocation2 + $0x80]]
    %v73 = vstv %s72
    %v74 = vmul.f32 %v73, %v50
    %v75 = vstv %s71
    %v76 = vadd.f32 %v75, %v74
    %s77 = sld [smem:[#allocation2 + $0x81]]
    %v78 = vstv %s77
    %v79 = vmul.f32 %v78, %v50
    %v81 = vrot.slane %v79, 1
    %v83 = vadd.f32 %v76, %v81
    %s84 = sld [smem:[#allocation2 + $0x82]]
    %v85 = vstv %s84
    %v86 = vmul.f32 %v85, %v50
    %v88 = vrot.slane %v86, 2
    %v90 = vadd.f32 %v83, %v88
    %v92 = vrot.slane %v90, 7
    %vm94 = vcmask 1040384
    %v95 = vsel %vm94, %v70, %v92
    %96 = vst [vmem:[#allocation9] sm:$0x3] %v95
    // Predicated region
    $region26: #{tpu_custom_call.1} parent=1 // pred_check
      _
    $region27: #{tpu_custom_call.1} parent=1 // pred_check_branch
      %98 = sbr.rel (0) target = $region29
    $region28: #{tpu_custom_call.1} parent=1 // pred_region
      %s100 = ssub.s32 32, 32
      %101 = vsyncadd [#allocation4], %s100
      %s103 = sshll.u32 [#allocation9], 4
      %s104 = int_to_ptr.vmem [resolvable:$true] %s103
      %106 = dma.vmem_to_hbm [thread:$0]  %s104, 32, %s3, [#allocation4]
    $region29: #{tpu_custom_call.1} parent=1 // pred_fallthru
      _
    // Predicated region
    $region30: #{tpu_custom_call.1} parent=1 // pred_check
      _
    $region31: #{tpu_custom_call.1} parent=1 // pred_check_branch
      %108 = sbr.rel (0) target = $region33
    $region32: #{tpu_custom_call.1} parent=1 // pred_region
      %109 = dma.done [#allocation4], 32
    $region33: #{tpu_custom_call.1} parent=1 // pred_fallthru
      _
    %110 = vsyncpa [#allocation3], 1
    %111 = vsyncpa [#allocation4], 1
    %112 = vsyncpa [#allocation5], 1
    %113 = vsyncpa [#allocation6], 1

</llo_original>
